<compile_context>
chip_gen: v5e
topology: v5e:2x2
jax: 0.10.0
libtpu: 0.0.40
codegen_flags: <defaults>
</compile_context>

<pallas_src>
import functools
import math

import jax
import jax.numpy as jnp
from jax import lax
from jax.experimental import pallas as pl
from jax.experimental.pallas import tpu as pltpu


def _round_up(v, m):
    return (v + m - 1) // m * m


# -----------------------------------------------------------------------------
# Plain-JAX glue: filter rotation + relaxed-weight einsum (parameter setup).
# -----------------------------------------------------------------------------
def rot_img(x, theta):
    """Rotate a stack of filters x:(N, C, H, W) by angle theta (radians)."""
    n, c, h, w = x.shape
    cos = jnp.cos(jnp.float32(theta))
    sin = jnp.sin(jnp.float32(theta))
    # normalized pixel-center coords, align_corners=False
    xs = (jnp.arange(w, dtype=jnp.float32) * 2.0 + 1.0) / w - 1.0
    ys = (jnp.arange(h, dtype=jnp.float32) * 2.0 + 1.0) / h - 1.0
    gy, gx = jnp.meshgrid(ys, xs, indexing="ij")
    grid_x = cos * gx - sin * gy
    grid_y = sin * gx + cos * gy
    # normalized -> pixel coordinates (align_corners=False)
    ix = ((grid_x + 1.0) * w - 1.0) * 0.5
    iy = ((grid_y + 1.0) * h - 1.0) * 0.5
    ix0 = jnp.floor(ix)
    iy0 = jnp.floor(iy)
    ix1 = ix0 + 1.0
    iy1 = iy0 + 1.0
    wx1 = ix - ix0
    wx0 = 1.0 - wx1
    wy1 = iy - iy0
    wy0 = 1.0 - wy1

    def corner(iyc, ixc):
        valid = ((iyc >= 0) & (iyc <= h - 1) & (ixc >= 0) & (ixc <= w - 1))
        iyi = jnp.clip(iyc, 0, h - 1).astype(jnp.int32)
        ixi = jnp.clip(ixc, 0, w - 1).astype(jnp.int32)
        vals = x[:, :, iyi, ixi]                      # (N, C, H, W)
        return vals * valid.astype(x.dtype)

    return (corner(iy0, ix0) * (wy0 * wx0)
            + corner(iy0, ix1) * (wy0 * wx1)
            + corner(iy1, ix0) * (wy1 * wx0)
            + corner(iy1, ix1) * (wy1 * wx1))


def generate_filter_bank(kernel, group_order):
    """kernel: (NFB, O, C_in, K, K) -> (NFB, O, G, C_in, K, K)."""
    nfb, o, c_in, k, _ = kernel.shape
    weights = kernel.reshape(nfb * o, c_in, k, k)
    fb = jnp.stack([rot_img(weights, -math.pi * 2.0 / group_order * i)
                    for i in range(group_order)])              # (G, NFB*O, C_in, K, K)
    fb = jnp.transpose(fb, (1, 0, 2, 3, 4)).reshape(nfb, o, group_order, c_in, k, k)
    return fb


def relaxed_conv_weights(kernel, relaxed_w, group_order):
    """-> conv weights of shape (O*G, C_in, K, K)."""
    nfb, o, c_in, k, _ = kernel.shape
    fb = generate_filter_bank(kernel, group_order)
    w = jnp.einsum("na,noa...->oa...", relaxed_w, fb)           # (O, G, C_in, K, K)
    return w.reshape(o * group_order, c_in, k, k)


# -----------------------------------------------------------------------------
# Pallas kernel: in-kernel im2col slab + single fused MXU matmul + leaky ReLU.
# -----------------------------------------------------------------------------
def _lifting_conv_kernel(x_ref, w_ref, o_ref, p_ref, *, k, c_in, w_pad, q_pad,
                         activation, negative_slope):
    # x_ref: (C_in, L_pad)      bf16, zero-padded image flattened over (H_p, W_p)
    # w_ref: (O*G, K*K*C_in)    bf16, inner dim ordered (kh, kw, ci)
    # o_ref: (O*G, Q_pad)       f32 output over the flattened (H, W_p) grid
    # p_ref: (K*K*C_in, Q_pad)  bf16 VMEM scratch (fused im2col slab)
    for kh in range(k):
        for kw in range(k):
            t = kh * k + kw
            delta = kh * w_pad + kw            # static flat shift for this tap
            p_ref[t * c_in:(t + 1) * c_in, :] = x_ref[:, delta:delta + q_pad]
    acc = jnp.dot(w_ref[...], p_ref[...], preferred_element_type=jnp.float32)
    if activation:
        acc = jnp.where(acc >= 0, acc, negative_slope * acc)    # leaky_relu(0.01)
    o_ref[...] = acc.astype(o_ref.dtype)


def rui_r_lifting_conv_cn(x, kernel, relaxed_w, group_order, activation=True):
    """x: (N, C_in, H, W) NCHW  ->  (N, O, G, W, H) like the PyTorch module."""
    n, c_in, hh, ww = x.shape
    nfb, o, _, k, _ = kernel.shape
    g = group_order
    c_out = o * g
    pad = (k - 1) // 2
    h_p, w_p = hh + 2 * pad, ww + 2 * pad

    # rotated + relaxed filters -> (O*G, K*K*C_in), inner order (kh, kw, ci)
    w = relaxed_conv_weights(kernel, relaxed_w, g)              # (O*G, C_in, K, K)
    w2d = jnp.transpose(w, (0, 2, 3, 1)).reshape(c_out, k * k * c_in)
    w2d = w2d.astype(jnp.bfloat16)

    # zero-pad + flatten the image row-major over (H_p, W_p); lane axis = flat
    # spatial.  Output is computed over the (H, W_p) grid (extra W-padding
    # columns are discarded below), padded to a 128-lane multiple.
    q_pad = _round_up(hh * w_p, 128)
    max_delta = (k - 1) * w_p + (k - 1)
    l_pad = _round_up(max(h_p * w_p, q_pad + max_delta), 128)
    x_p = jnp.pad(x, ((0, 0), (0, 0), (pad, pad), (pad, pad)))
    x_flat = x_p.reshape(n, c_in, h_p * w_p)
    x_flat = jnp.pad(x_flat, ((0, 0), (0, 0), (0, l_pad - h_p * w_p)))
    x_flat = x_flat.astype(jnp.bfloat16)

    kern = functools.partial(_lifting_conv_kernel, k=k, c_in=c_in, w_pad=w_p,
                             q_pad=q_pad, activation=activation,
                             negative_slope=0.01)
    flops = 2 * n * hh * ww * k * k * c_in * c_out
    bytes_accessed = x_flat.size * 2 + w2d.size * 2 + n * c_out * q_pad * 4

    # TODO(synk): for very large H*W, add a second "parallel" grid axis over
    # output-row blocks (and re-derive tile sizes for v7x's 64 MiB VMEM); at
    # these shapes one batch element per step already fits trivially.
    out_q = pl.pallas_call(
        kern,
        out_shape=jax.ShapeDtypeStruct((n, c_out, q_pad), jnp.float32),
        grid_spec=pltpu.PrefetchScalarGridSpec(
            num_scalar_prefetch=0,
            grid=(n,),
            in_specs=[
                pl.BlockSpec((None, c_in, l_pad), lambda b: (b, 0, 0)),
                # constant block index (0, 0) for every step -> the tiny weight
                # slab is only DMA'd once (no per-step re-fetch).
                pl.BlockSpec((c_out, k * k * c_in), lambda b: (0, 0)),
            ],
            out_specs=pl.BlockSpec((None, c_out, q_pad), lambda b: (b, 0, 0)),
            scratch_shapes=[pltpu.VMEM((k * k * c_in, q_pad), jnp.bfloat16)],
        ),
        compiler_params=pltpu.CompilerParams(
            dimension_semantics=("parallel",)),
        cost_estimate=pl.CostEstimate(flops=flops, transcendentals=0,
                                      bytes_accessed=bytes_accessed),
    )(x_flat, w2d)

    # drop padded columns, restore NCHW, then the module's final .view
    out = out_q[:, :, :hh * w_p].reshape(n, c_out, hh, w_p)[:, :, :, :ww]
    # matches torch's x.view(N, O, G, x.shape[-1], x.shape[-2]) on NCHW output
    return out.reshape(n, o, g, ww, hh)


if __name__ == "__main__":
    # small deterministic config: N=2, C_in=4, H=W=16, O=8, K=3, G=4, NFB=2
    N, C_IN, H, W = 2, 4, 16, 16
    O, K, G, NFB = 8, 3, 4, 2

    key = jax.random.PRNGKey(0)
    k_kernel, k_x = jax.random.split(key)

    # kaiming_uniform_(a=sqrt(5)) on a (NFB, O, C_in, K, K) tensor:
    # fan_in = size(1) * prod(size[2:]) ; bound = 1/sqrt(fan_in)
    fan_in = O * C_IN * K * K
    bound = 1.0 / math.sqrt(fan_in)
    kernel = jax.random.uniform(k_kernel, (NFB, O, C_IN, K, K),
                                dtype=jnp.float32, minval=-bound, maxval=bound)
    relaxed_weights = jnp.ones((NFB, G), dtype=jnp.float32)     # module __init__
    x = jax.random.normal(k_x, (N, C_IN, H, W), dtype=jnp.float32)

    out = jax.block_until_ready(
        rui_r_lifting_conv_cn(x, kernel, relaxed_weights, G, activation=True))

    # pure-JAX reference (same weight preprocessing; inputs rounded to bf16 the
    # same way the kernel path rounds them, accumulation in f32)
    w_full = relaxed_conv_weights(kernel, relaxed_weights, G)
    x_bf = x.astype(jnp.bfloat16).astype(jnp.float32)
    w_bf = w_full.astype(jnp.bfloat16).astype(jnp.float32)
    p = (K - 1) // 2
    ref = lax.conv_general_dilated(x_bf, w_bf, (1, 1), [(p, p), (p, p)],
                                   dimension_numbers=("NCHW", "OIHW", "NCHW"),
                                   precision=lax.Precision.HIGHEST)
    ref = jnp.where(ref >= 0, ref, 0.01 * ref).reshape(N, O, G, W, H)

    assert out.shape == (N, O, G, W, H), out.shape
    assert jnp.allclose(out, ref, atol=2e-3, rtol=2e-3), \
        float(jnp.max(jnp.abs(out - ref)))
    print("KERNEL_OK")
</pallas_src>

<mosaic_0001>
module attributes {stable_mosaic.version = 11 : i64} {
  func.func @_lifting_conv_kernel(%arg0: i32, %arg1: memref<1x4x512xbf16, #tpu.memory_space<vmem>>, %arg2: memref<32x36xbf16, #tpu.memory_space<vmem>>, %arg3: memref<1x32x384xf32, #tpu.memory_space<vmem>>, %arg4: memref<36x384xbf16, #tpu.memory_space<vmem>>) attributes {dimension_semantics = [#tpu.dimension_semantics<parallel>], iteration_bounds = array<i64: 2>, scalar_prefetch = 0 : i64, scratch_operands = 1 : i64, tpu.core_type = #tpu.core_type<tc>, window_params = [{transform_indices = @transform_0, window_bounds = array<i64: 1, 4, 512>}, {pipeline_mode = #tpu.pipeline_mode<synchronous>, transform_indices = @transform_1, window_bounds = array<i64: 32, 36>}, {transform_indices = @transform_2, window_bounds = array<i64: 1, 32, 384>}]} {
    %c0 = arith.constant 0 : index
    %c0_0 = arith.constant 0 : index
    %c0_1 = arith.constant 0 : index
    %0 = vector.load %arg1[%c0, %c0_0, %c0_1] : memref<1x4x512xbf16, #tpu.memory_space<vmem>>, vector<1x4x384xbf16>
    %1 = vector.shape_cast %0 : vector<1x4x384xbf16> to vector<4x384xbf16>
    %c0_2 = arith.constant 0 : index
    %c0_3 = arith.constant 0 : index
    %2 = vector.load %arg4[%c0_2, %c0_3] : memref<36x384xbf16, #tpu.memory_space<vmem>>, vector<4x384xbf16>
    tpu.vector_store %arg4[%c0_2, %c0_3], %1 {strides = array<i32>} : memref<36x384xbf16, #tpu.memory_space<vmem>>, vector<4x384xbf16>,
    %c0_4 = arith.constant 0 : index
    %c0_5 = arith.constant 0 : index
    %c1 = arith.constant 1 : index
    %3 = vector.load %arg1[%c0_4, %c0_5, %c1] : memref<1x4x512xbf16, #tpu.memory_space<vmem>>, vector<1x4x384xbf16>
    %4 = vector.shape_cast %3 : vector<1x4x384xbf16> to vector<4x384xbf16>
    %c4 = arith.constant 4 : index
    %c0_6 = arith.constant 0 : index
    %5 = vector.load %arg4[%c4, %c0_6] : memref<36x384xbf16, #tpu.memory_space<vmem>>, vector<4x384xbf16>
    tpu.vector_store %arg4[%c4, %c0_6], %4 {strides = array<i32>} : memref<36x384xbf16, #tpu.memory_space<vmem>>, vector<4x384xbf16>,
    %c0_7 = arith.constant 0 : index
    %c0_8 = arith.constant 0 : index
    %c2 = arith.constant 2 : index
    %6 = vector.load %arg1[%c0_7, %c0_8, %c2] : memref<1x4x512xbf16, #tpu.memory_space<vmem>>, vector<1x4x384xbf16>
    %7 = vector.shape_cast %6 : vector<1x4x384xbf16> to vector<4x384xbf16>
    %c8 = arith.constant 8 : index
    %c0_9 = arith.constant 0 : index
    %8 = vector.load %arg4[%c8, %c0_9] : memref<36x384xbf16, #tpu.memory_space<vmem>>, vector<4x384xbf16>
    tpu.vector_store %arg4[%c8, %c0_9], %7 {strides = array<i32>} : memref<36x384xbf16, #tpu.memory_space<vmem>>, vector<4x384xbf16>,
    %c0_10 = arith.constant 0 : index
    %c0_11 = arith.constant 0 : index
    %c18 = arith.constant 18 : index
    %9 = vector.load %arg1[%c0_10, %c0_11, %c18] : memref<1x4x512xbf16, #tpu.memory_space<vmem>>, vector<1x4x384xbf16>
    %10 = vector.shape_cast %9 : vector<1x4x384xbf16> to vector<4x384xbf16>
    %c12 = arith.constant 12 : index
    %c0_12 = arith.constant 0 : index
    %11 = vector.load %arg4[%c12, %c0_12] : memref<36x384xbf16, #tpu.memory_space<vmem>>, vector<4x384xbf16>
    tpu.vector_store %arg4[%c12, %c0_12], %10 {strides = array<i32>} : memref<36x384xbf16, #tpu.memory_space<vmem>>, vector<4x384xbf16>,
    %c0_13 = arith.constant 0 : index
    %c0_14 = arith.constant 0 : index
    %c19 = arith.constant 19 : index
    %12 = vector.load %arg1[%c0_13, %c0_14, %c19] : memref<1x4x512xbf16, #tpu.memory_space<vmem>>, vector<1x4x384xbf16>
    %13 = vector.shape_cast %12 : vector<1x4x384xbf16> to vector<4x384xbf16>
    %c16 = arith.constant 16 : index
    %c0_15 = arith.constant 0 : index
    %14 = vector.load %arg4[%c16, %c0_15] : memref<36x384xbf16, #tpu.memory_space<vmem>>, vector<4x384xbf16>
    tpu.vector_store %arg4[%c16, %c0_15], %13 {strides = array<i32>} : memref<36x384xbf16, #tpu.memory_space<vmem>>, vector<4x384xbf16>,
    %c0_16 = arith.constant 0 : index
    %c0_17 = arith.constant 0 : index
    %c20 = arith.constant 20 : index
    %15 = vector.load %arg1[%c0_16, %c0_17, %c20] : memref<1x4x512xbf16, #tpu.memory_space<vmem>>, vector<1x4x384xbf16>
    %16 = vector.shape_cast %15 : vector<1x4x384xbf16> to vector<4x384xbf16>
    %c20_18 = arith.constant 20 : index
    %c0_19 = arith.constant 0 : index
    %17 = vector.load %arg4[%c20_18, %c0_19] : memref<36x384xbf16, #tpu.memory_space<vmem>>, vector<4x384xbf16>
    tpu.vector_store %arg4[%c20_18, %c0_19], %16 {strides = array<i32>} : memref<36x384xbf16, #tpu.memory_space<vmem>>, vector<4x384xbf16>,
    %c0_20 = arith.constant 0 : index
    %c0_21 = arith.constant 0 : index
    %c36 = arith.constant 36 : index
    %18 = vector.load %arg1[%c0_20, %c0_21, %c36] : memref<1x4x512xbf16, #tpu.memory_space<vmem>>, vector<1x4x384xbf16>
    %19 = vector.shape_cast %18 : vector<1x4x384xbf16> to vector<4x384xbf16>
    %c24 = arith.constant 24 : index
    %c0_22 = arith.constant 0 : index
    %20 = vector.load %arg4[%c24, %c0_22] : memref<36x384xbf16, #tpu.memory_space<vmem>>, vector<4x384xbf16>
    tpu.vector_store %arg4[%c24, %c0_22], %19 {strides = array<i32>} : memref<36x384xbf16, #tpu.memory_space<vmem>>, vector<4x384xbf16>,
    %c0_23 = arith.constant 0 : index
    %c0_24 = arith.constant 0 : index
    %c37 = arith.constant 37 : index
    %21 = vector.load %arg1[%c0_23, %c0_24, %c37] : memref<1x4x512xbf16, #tpu.memory_space<vmem>>, vector<1x4x384xbf16>
    %22 = vector.shape_cast %21 : vector<1x4x384xbf16> to vector<4x384xbf16>
    %c28 = arith.constant 28 : index
    %c0_25 = arith.constant 0 : index
    %23 = vector.load %arg4[%c28, %c0_25] : memref<36x384xbf16, #tpu.memory_space<vmem>>, vector<4x384xbf16>
    tpu.vector_store %arg4[%c28, %c0_25], %22 {strides = array<i32>} : memref<36x384xbf16, #tpu.memory_space<vmem>>, vector<4x384xbf16>,
    %c0_26 = arith.constant 0 : index
    %c0_27 = arith.constant 0 : index
    %c38 = arith.constant 38 : index
    %24 = vector.load %arg1[%c0_26, %c0_27, %c38] : memref<1x4x512xbf16, #tpu.memory_space<vmem>>, vector<1x4x384xbf16>
    %25 = vector.shape_cast %24 : vector<1x4x384xbf16> to vector<4x384xbf16>
    %c32 = arith.constant 32 : index
    %c0_28 = arith.constant 0 : index
    %26 = vector.load %arg4[%c32, %c0_28] : memref<36x384xbf16, #tpu.memory_space<vmem>>, vector<4x384xbf16>
    tpu.vector_store %arg4[%c32, %c0_28], %25 {strides = array<i32>} : memref<36x384xbf16, #tpu.memory_space<vmem>>, vector<4x384xbf16>,
    %c0_29 = arith.constant 0 : index
    %c0_30 = arith.constant 0 : index
    %27 = vector.load %arg2[%c0_29, %c0_30] : memref<32x36xbf16, #tpu.memory_space<vmem>>, vector<32x36xbf16>
    %c0_31 = arith.constant 0 : index
    %c0_32 = arith.constant 0 : index
    %28 = vector.load %arg4[%c0_31, %c0_32] : memref<36x384xbf16, #tpu.memory_space<vmem>>, vector<36x384xbf16>
    %cst = arith.constant dense<0.000000e+00> : vector<32x384xf32>
    %29 = tpu.matmul %27, %28, %cst {dimension_numbers = #tpu.dot_dimension_numbers<[1], [0], [0], [1], [0, 0, 1, 1], [], []>} : vector<32x36xbf16>, vector<36x384xbf16>, vector<32x384xf32> -> vector<32x384xf32>
    %cst_33 = arith.constant 0.000000e+00 : f32
    %30 = vector.broadcast %cst_33 : f32 to vector<32x384xf32>
    %31 = arith.cmpf oge, %29, %30 : vector<32x384xf32>
    %cst_34 = arith.constant 0.00999999977 : f32
    %32 = vector.broadcast %cst_34 : f32 to vector<32x384xf32>
    %33 = arith.mulf %32, %29 : vector<32x384xf32>
    %34 = arith.select %31, %29, %33 : vector<32x384xi1>, vector<32x384xf32>
    %c0_35 = arith.constant 0 : index
    %c0_36 = arith.constant 0 : index
    %c0_37 = arith.constant 0 : index
    %35 = vector.load %arg3[%c0_35, %c0_36, %c0_37] : memref<1x32x384xf32, #tpu.memory_space<vmem>>, vector<1x32x384xf32>
    %36 = vector.shape_cast %35 : vector<1x32x384xf32> to vector<32x384xf32>
    %37 = vector.shape_cast %34 : vector<32x384xf32> to vector<1x32x384xf32>
    tpu.vector_store %arg3[%c0_35, %c0_36, %c0_37], %37 {strides = array<i32>} : memref<1x32x384xf32, #tpu.memory_space<vmem>>, vector<1x32x384xf32>,
    return
  }
  func.func @transform_0(%arg0: i32) -> (i32, i32, i32) {
    %c0_i32 = arith.constant 0 : i32
    %c0_i32_0 = arith.constant 0 : i32
    %c0_i32_1 = arith.constant 0 : i32
    return %arg0, %c0_i32, %c0_i32_0 : i32, i32, i32
  }
  func.func @transform_1(%arg0: i32) -> (i32, i32) {
    %c0_i32 = arith.constant 0 : i32
    %c0_i32_0 = arith.constant 0 : i32
    %c0_i32_1 = arith.constant 0 : i32
    return %c0_i32, %c0_i32_0 : i32, i32
  }
  func.func @transform_2(%arg0: i32) -> (i32, i32, i32) {
    %c0_i32 = arith.constant 0 : i32
    %c0_i32_0 = arith.constant 0 : i32
    %c0_i32_1 = arith.constant 0 : i32
    return %arg0, %c0_i32, %c0_i32_0 : i32, i32, i32
  }
}

</mosaic_0001>

<llo_original>
// kernel: tpu_custom_call.1
$region0: #{tpu_custom_call.1}
  #allocation0 [shape = 'u32[]', space=smem, size = 0x4, offset = 0x4, fixed_abs, tag = 'smem constant byte address 0x4 - core index']
  #allocation1 [shape = 'u32[72,128]{1,0:T(1,128)}', space=vmem, size = 0x9000, scoped, tag = 'internal scratch']
  #allocation2 [shape = 'bf16[36,384]{1,0:T(8,128)(2,1)}', space=vmem, size = 0x7800, scoped, tag = 'scratch operand']
  %s0 = inlined_call_operand.hbm [shape: bf16[2,4,512], index: 0, kind: input, shape index: {}]
  %s1 = inlined_call_operand.hbm [shape: bf16[32,36], index: 1, kind: input, shape index: {}]
  %s2 = inlined_call_operand.hbm [shape: f32[2,32,384], index: 2, kind: output, shape index: {}]
  %s3 = sld [smem:[#allocation0]]
  $region49: #{tpu_custom_call.1} parent=0
    _
  %s5 = ssub.s32 1, %s3
  %s6 = scalar_select 0, %s5, %s3
  $region1: #{tpu_custom_call.1} parent=0
    #allocation3 [shape = 'u8[8192]{0}', space=vmem, size = 0x2000, scoped, tag = 'input window, operand 0']
    #allocation4 [shape = 's32[2]{0}', space=sflag, size = 0x8, scoped, tag = 'scoped memory for tpu_custom_call.1']
    #allocation5 [shape = 's32[2]{0}', space=sflag, size = 0x8, scoped, tag = 'scoped memory for tpu_custom_call.1']
    #allocation6 [shape = 'u8[8192]{0}', space=vmem, size = 0x2000, scoped, tag = 'input window, operand 1, single buffered']
    #allocation7 [shape = 's32[1]{0}', space=sflag, size = 0x4, scoped, tag = 'scoped memory for tpu_custom_call.1']
    #allocation8 [shape = 'u8[98304]{0}', space=vmem, size = 0x18000, scoped, tag = 'output window, operand 0']
    %7 = vsyncpa [#allocation4], 0
    %s8 = scalar_lea.sflag [#allocation4], 1
    %9 = vsyncpa %s8, 0
    %10 = vsyncpa [#allocation7], 0
    %11 = vsyncpa [#allocation5], 0
    %s12 = scalar_lea.sflag [#allocation5], 1
    %13 = vsyncpa %s12, 0
    loop: start=0, step=1, limit=4
    $region2: #{tpu_custom_call.1} parent=1 // loop_pre_header
      _
    $region3: #{tpu_custom_call.1} parent=1 // loop_header
      %s15 = sphi 0, %s19
      %p16 = scmp.ge.s32.totalorder %s15, 4
      %s25 = sphi 0, %s27
      %s28 = sphi 0, %s25
      %s29 = sphi 0, %s28
      %s45 = sphi 0, %s29
      %s49 = sphi 0, %s49
      %s51 = sphi 0, %s49
      %s52 = sphi 0, %s51
      %s66 = sphi 0, %s52
      %s72 = sphi 0, %s74
      %s75 = sphi 0, %s72
      %s76 = sphi 0, %s75
      %s92 = sphi 0, %s76
    $region4: #{tpu_custom_call.1} parent=1 // loop_header_branch
      %18 = sbr.rel (%p16) target = $region8
    $region5: #{tpu_custom_call.1} parent=1 // loop_body
      %s20 = ssub.s32 %s15, 1
      %s21 = ssub.s32 %s15, 2
      %s22 = sadd.s32 %s15, 1
      %s23 = ssub.s32 %s15, %s22
      %p24 = scmp.eq.s32.totalorder %s23, 0
      %s26 = sadd.s32 %s25, 1
      %s27 = scalar_select %p24, %s25, %s26
      %p30 = pneg %p24
      %p31 = scmp.eq.s32.totalorder %s15, 1
      %p32 = por %p30, %p31
      %p33 = scmp.ne.s32.totalorder %s25, %s28
      %p34 = scmp.eq.s32.totalorder %s15, 0
      %p35 = por %p33, %p34
      %p36 = scmp.ne.s32.totalorder %s25, %s28
      %p37 = scmp.eq.s32.totalorder %s20, 1
      %p38 = por %p36, %p37
      %p39 = scmp.ne.s32.totalorder %s28, %s29
      %p40 = scmp.eq.s32.totalorder %s20, 0
      %p41 = por %p39, %p40
      %p42 = scmp.ne.s32.totalorder %s28, %s29
      %p43 = scmp.eq.s32.totalorder %s21, 1
      %p44 = por %p42, %p43
      %p46 = scmp.ne.s32.totalorder %s29, %s45
      %p47 = scmp.eq.s32.totalorder %s21, 0
      %p48 = por %p46, %p47
      %s50 = sadd.s32 %s49, 1
      %p53 = scmp.eq.s32.totalorder %s15, 1
      %p54 = scmp.ne.s32.totalorder %s49, %s51
      %p55 = scmp.eq.s32.totalorder %s15, 0
      %p56 = por %p54, %p55
      %p57 = scmp.ne.s32.totalorder %s49, %s51
      %p58 = scmp.eq.s32.totalorder %s20, 1
      %p59 = por %p57, %p58
      %p60 = scmp.ne.s32.totalorder %s51, %s52
      %p61 = scmp.eq.s32.totalorder %s20, 0
      %p62 = por %p60, %p61
      %p63 = scmp.ne.s32.totalorder %s51, %s52
      %p64 = scmp.eq.s32.totalorder %s21, 1
      %p65 = por %p63, %p64
      %p67 = scmp.ne.s32.totalorder %s52, %s66
      %p68 = scmp.eq.s32.totalorder %s21, 0
      %p69 = por %p67, %p68
      %s70 = ssub.s32 %s15, %s22
      %p71 = scmp.eq.s32.totalorder %s70, 0
      %s73 = sadd.s32 %s72, 1
      %s74 = scalar_select %p71, %s72, %s73
      %p77 = pneg %p71
      %p78 = scmp.eq.s32.totalorder %s15, 1
      %p79 = por %p77, %p78
      %p80 = scmp.ne.s32.totalorder %s72, %s75
      %p81 = scmp.eq.s32.totalorder %s15, 0
      %p82 = por %p80, %p81
      %p83 = scmp.ne.s32.totalorder %s72, %s75
      %p84 = scmp.eq.s32.totalorder %s20, 1
      %p85 = por %p83, %p84
      %p86 = scmp.ne.s32.totalorder %s75, %s76
      %p87 = scmp.eq.s32.totalorder %s20, 0
      %p88 = por %p86, %p87
      %p89 = scmp.ne.s32.totalorder %s75, %s76
      %p90 = scmp.eq.s32.totalorder %s21, 1
      %p91 = por %p89, %p90
      %p93 = scmp.ne.s32.totalorder %s76, %s92
      %p94 = scmp.eq.s32.totalorder %s21, 0
      %p95 = por %p93, %p94
      %p96 = scmp.le.s32.totalorder 1, %s15
      %p97 = scmp.lt.s32.totalorder %s15, 3
      %p98 = pnand %p96, %p97
      %p99 = pneg %p98
      // Predicated region
      $region9: #{tpu_custom_call.1} parent=5 // pred_check
        _
      $region10: #{tpu_custom_call.1} parent=5 // pred_check_branch
        %101 = sbr.rel (%p98) target = $region12
      $region11: #{tpu_custom_call.1} parent=5 // pred_region
        %s102 = ssub.s32 %s15, 1
        // Predicated region
        $region13: #{tpu_custom_call.1} parent=11 // pred_check
          %p103 = pneg %p62
        $region14: #{tpu_custom_call.1} parent=11 // pred_check_branch
          %105 = sbr.rel (%p103) target = $region16
        $region15: #{tpu_custom_call.1} parent=11 // pred_region
          %107 = vsyncadd [#allocation7], 0
          %s108 = sshll.u32 %s1, 4
          %s109 = int_to_ptr.hbm [resolvable:$true] %s108
          %s110 = sshll.u32 [#allocation6], 4
          %s111 = int_to_ptr.vmem [resolvable:$true] %s110
          %116 = dma.hbm_to_vmem [thread:$0]  %s109, 256, %s111, [#allocation7], 64, 64, 4
        $region16: #{tpu_custom_call.1} parent=11 // pred_fallthru
          _
      $region12: #{tpu_custom_call.1} parent=5 // pred_fallthru
        _
      %p117 = scmp.lt.s32.totalorder %s15, 2
      // Predicated region
      $region17: #{tpu_custom_call.1} parent=5 // pred_check
        %p118 = pneg %p117
      $region18: #{tpu_custom_call.1} parent=5 // pred_check_branch
        %120 = sbr.rel (%p118) target = $region20
      $region19: #{tpu_custom_call.1} parent=5 // pred_region
        // Predicated region
        $region21: #{tpu_custom_call.1} parent=19 // pred_check
          %p121 = pneg %p35
        $region22: #{tpu_custom_call.1} parent=19 // pred_check_branch
          %123 = sbr.rel (%p121) target = $region24
        $region23: #{tpu_custom_call.1} parent=19 // pred_region
          %s124 = sand.u32 %s25, 1
          %s125 = scalar_lea.sflag [#allocation4], %s124
          %s126 = sand.u32 %s25, 1
          %s127 = smul.addr %s126, 8
          %s128 = scalar_lea.vmem [#allocation3], %s127
          %130 = vsyncadd %s125, 0
          %s131 = smul.addr %s15, 4
          %s132 = smul.addr %s131, 2
          %s133 = scalar_lea.hbm %s0, %s132
          %s135 = sshll.u32 %s133, 4
          %s136 = int_to_ptr.hbm [resolvable:$true] %s135
          %s137 = sshll.u32 %s128, 4
          %s138 = int_to_ptr.vmem [resolvable:$true] %s137
          %140 = dma.hbm_to_vmem [thread:$0]  %s136, 128, %s138, %s125
        $region24: #{tpu_custom_call.1} parent=19 // pred_fallthru
          _
      $region20: #{tpu_custom_call.1} parent=5 // pred_fallthru
        _
      %p141 = scmp.le.s32.totalorder 1, %s15
      %p142 = scmp.lt.s32.totalorder %s15, 3
      %p143 = pnand %p141, %p142
      %p144 = pneg %p143
      // Predicated region
      $region25: #{tpu_custom_call.1} parent=5 // pred_check
        _
      $region26: #{tpu_custom_call.1} parent=5 // pred_check_branch
        %146 = sbr.rel (%p143) target = $region28
      $region27: #{tpu_custom_call.1} parent=5 // pred_region
        %s147 = ssub.s32 %s15, 1
        %s148 = sand.u32 %s28, 1
        %s149 = scalar_lea.sflag [#allocation4], %s148
        %s150 = sand.u32 %s28, 1
        %s151 = smul.addr %s150, 8
        %s152 = scalar_lea.vmem [#allocation3], %s151
        // Predicated region
        $region29: #{tpu_custom_call.1} parent=27 // pred_check
          %p153 = pneg %p41
        $region30: #{tpu_custom_call.1} parent=27 // pred_check_branch
          %155 = sbr.rel (%p153) target = $region32
        $region31: #{tpu_custom_call.1} parent=27 // pred_region
          %157 = dma.done %s149, 128
        $region32: #{tpu_custom_call.1} parent=27 // pred_fallthru
          _
        // Predicated region
        $region33: #{tpu_custom_call.1} parent=27 // pred_check
          %p158 = pneg %p62
        $region34: #{tpu_custom_call.1} parent=27 // pred_check_branch
          %160 = sbr.rel (%p158) target = $region36
        $region35: #{tpu_custom_call.1} parent=27 // pred_region
          %162 = dma.done [#allocation7], 256
        $region36: #{tpu_custom_call.1} parent=27 // pred_fallthru
          _
        %s163 = sand.u32 %s28, 1
        %s164 = scalar_lea.sflag [#allocation4], %s163
        %s165 = sand.u32 %s28, 1
        %s166 = smul.addr %s165, 8
        %s167 = scalar_lea.vmem [#allocation3], %s166
        %p168 = pneg %p41
        %p169 = pneg %p38
        %p170 = pneg %p62
        %p171 = pneg %p59
        %p172 = pneg %p88
        %p173 = pneg %p85
        %s174 = sand.u32 %s75, 1
        %s175 = scalar_lea.sflag [#allocation5], %s174
        %s176 = sand.u32 %s75, 1
        %s177 = smul.addr %s176, 96
        %s178 = scalar_lea.vmem [#allocation8], %s177
        %v180 = vld [vmem:[%s152] sm:$0x3f]
        %182 = vst [vmem:[#allocation1] ss:$2 sm:$0xff] %v180
        %v183 = vld.sshfl [vmem:[#allocation1] sm:$0xff pattern:$0x75643120]
        %v184 = vld.sshfl [vmem:[#allocation1 + $0x8] sm:$0xff pattern:$0x75643120]
        %187 = vst [vmem:[#allocation2] sm:$0x33] %v183
        %188 = vst [vmem:[#allocation2 + $0x8] sm:$0x3] %v184
        %v189 = vld [vmem:[%s152] sm:$0xff]
        %s191 = scalar_lea.vmem [#allocation1], 1
        %192 = vst [vmem:[%s191] ss:$2 sm:$0xff] %v189
        %v193 = vld.sshfl [vmem:[#allocation1] sm:$0xff pattern:$0x75643120]
        %v195 = vld.sshfl [vmem:[#allocation1 + $0x8] sm:$0xff pattern:$0x75643120]
        %197 = vrot.lane.b32.xlu0 %v193, 127
        %v198 = vpop.permute.xlu0 %197
        %199 = vrot.lane.b32.xlu0 %v195, 127
        %v200 = vpop.permute.xlu0 %199
        %v201 = vrot.slane %v198, 4
        %v202 = vrot.slane %v200, 4
        %vm203 = vcmask 1043456
        %v204 = vsel %vm203, %v201, %v202
        %vm205 = vcmask 1039360
        %v206 = vsel %vm205, %v198, %v204
        %v207 = vsel %vm205, %v200, %v202
        %210 = vst [vmem:[#allocation2] sm:$0xcc] %v206
        %211 = vst [vmem:[#allocation2 + $0x8] sm:$0xc] %v207
        %v212 = vld [vmem:[%s152] sm:$0xff]
        %214 = vst [vmem:[#allocation1] ss:$2 sm:$0xff] %v212
        %v215 = vld.sshfl [vmem:[#allocation1] sm:$0xff pattern:$0x75643120]
        %v217 = vld.sshfl [vmem:[#allocation1 + $0x8] sm:$0xff pattern:$0x75643120]
        %219 = vrot.lane.b32.xlu0 %v215, 126
        %v220 = vpop.permute.xlu0 %219
        %221 = vrot.lane.b32.xlu0 %v217, 126
        %v222 = vpop.permute.xlu0 %221
        %v223 = vrot.slane %v220, 4
        %v224 = vrot.slane %v222, 4
        %v225 = vsel %vm203, %v223, %v224
        %vm226 = vcmask 1031168
        %v227 = vsel %vm226, %v220, %v225
        %v228 = vsel %vm226, %v222, %v224
        %231 = vst [vmem:[#allocation2 + $0xc] sm:$0x33] %v227
        %232 = vst [vmem:[#allocation2 + $0x14] sm:$0x3] %v228
        %v233 = vld [vmem:[%s152] sm:$0xff]
        %s235 = scalar_lea.vmem [#allocation1], 1
        %236 = vst [vmem:[%s235] ss:$2 sm:$0xff] %v233
        %v237 = vld.sshfl [vmem:[#allocation1] sm:$0xff pattern:$0x75643120]
        %v239 = vld.sshfl [vmem:[#allocation1 + $0x8] sm:$0xff pattern:$0x75643120]
        %241 = vrot.lane.b32.xlu0 %v237, 110
        %v242 = vpop.permute.xlu0 %241
        %243 = vrot.lane.b32.xlu0 %v239, 110
        %v244 = vpop.permute.xlu0 %243
        %v245 = vrot.slane %v242, 4
        %v246 = vrot.slane %v244, 4
        %v247 = vsel %vm203, %v245, %v246
        %vm248 = vcmask 900096
        %v249 = vsel %vm248, %v242, %v247
        %v250 = vsel %vm248, %v244, %v246
        %253 = vst [vmem:[#allocation2 + $0xc] sm:$0xcc] %v249
        %254 = vst [vmem:[#allocation2 + $0x14] sm:$0xc] %v250
        %v255 = vld [vmem:[%s152] sm:$0xff]
        %257 = vst [vmem:[#allocation1] ss:$2 sm:$0xff] %v255
        %v258 = vld.sshfl [vmem:[#allocation1] sm:$0xff pattern:$0x75643120]
        %v260 = vld.sshfl [vmem:[#allocation1 + $0x8] sm:$0xff pattern:$0x75643120]
        %262 = vrot.lane.b32.xlu0 %v258, 109
        %v263 = vpop.permute.xlu0 %262
        %264 = vrot.lane.b32.xlu0 %v260, 109
        %v265 = vpop.permute.xlu0 %264
        %v266 = vrot.slane %v263, 4
        %v267 = vrot.slane %v265, 4
        %v268 = vsel %vm203, %v266, %v267
        %vm269 = vcmask 891904
        %v270 = vsel %vm269, %v263, %v268
        %v271 = vsel %vm269, %v265, %v267
        %274 = vst [vmem:[#allocation2 + $0x18] sm:$0x33] %v270
        %275 = vst [vmem:[#allocation2 + $0x20] sm:$0x3] %v271
        %v276 = vld [vmem:[%s152] sm:$0xff]
        %s278 = scalar_lea.vmem [#allocation1], 1
        %279 = vst [vmem:[%s278] ss:$2 sm:$0xff] %v276
        %v280 = vld.sshfl [vmem:[#allocation1] sm:$0xff pattern:$0x75643120]
        %v282 = vld.sshfl [vmem:[#allocation1 + $0x8] sm:$0xff pattern:$0x75643120]
        %284 = vrot.lane.b32.xlu0 %v280, 108
        %v285 = vpop.permute.xlu0 %284
        %286 = vrot.lane.b32.xlu0 %v282, 108
        %v287 = vpop.permute.xlu0 %286
        %v288 = vrot.slane %v285, 4
        %v289 = vrot.slane %v287, 4
        %v290 = vsel %vm203, %v288, %v289
        %vm291 = vcmask 883712
        %v292 = vsel %vm291, %v285, %v290
        %v293 = vsel %vm291, %v287, %v289
        %296 = vst [vmem:[#allocation2 + $0x18] sm:$0xcc] %v292
        %297 = vst [vmem:[#allocation2 + $0x20] sm:$0xc] %v293
        %v298 = vld [vmem:[%s152] sm:$0xff]
        %300 = vst [vmem:[#allocation1] ss:$2 sm:$0xff] %v298
        %v301 = vld.sshfl [vmem:[#allocation1] sm:$0xff pattern:$0x75643120]
        %v303 = vld.sshfl [vmem:[#allocation1 + $0x8] sm:$0xff pattern:$0x75643120]
        %305 = vrot.lane.b32.xlu0 %v301, 92
        %v306 = vpop.permute.xlu0 %305
        %307 = vrot.lane.b32.xlu0 %v303, 92
        %v308 = vpop.permute.xlu0 %307
        %v309 = vrot.slane %v306, 4
        %v310 = vrot.slane %v308, 4
        %v311 = vsel %vm203, %v309, %v310
        %vm312 = vcmask 752640
        %v313 = vsel %vm312, %v306, %v311
        %v314 = vsel %vm312, %v308, %v310
        %317 = vst [vmem:[#allocation2 + $0x24] sm:$0x33] %v313
        %318 = vst [vmem:[#allocation2 + $0x2c] sm:$0x3] %v314
        %v319 = vld [vmem:[%s152] sm:$0xff]
        %s321 = scalar_lea.vmem [#allocation1], 1
        %322 = vst [vmem:[%s321] ss:$2 sm:$0xff] %v319
        %v323 = vld.sshfl [vmem:[#allocation1] sm:$0xff pattern:$0x75643120]
        %v325 = vld.sshfl [vmem:[#allocation1 + $0x8] sm:$0xff pattern:$0x75643120]
        %327 = vrot.lane.b32.xlu0 %v323, 91
        %v328 = vpop.permute.xlu0 %327
        %329 = vrot.lane.b32.xlu0 %v325, 91
        %v330 = vpop.permute.xlu0 %329
        %v331 = vrot.slane %v328, 4
        %v332 = vrot.slane %v330, 4
        %v333 = vsel %vm203, %v331, %v332
        %vm334 = vcmask 744448
        %v335 = vsel %vm334, %v328, %v333
        %v336 = vsel %vm334, %v330, %v332
        %339 = vst [vmem:[#allocation2 + $0x24] sm:$0xcc] %v335
        %340 = vst [vmem:[#allocation2 + $0x2c] sm:$0xc] %v336
        %v341 = vld [vmem:[%s152] sm:$0xff]
        %343 = vst [vmem:[#allocation1] ss:$2 sm:$0xff] %v341
        %v344 = vld.sshfl [vmem:[#allocation1] sm:$0xff pattern:$0x75643120]
        %v346 = vld.sshfl [vmem:[#allocation1 + $0x8] sm:$0xff pattern:$0x75643120]
        %348 = vrot.lane.b32.xlu0 %v344, 90
        %v349 = vpop.permute.xlu0 %348
        %350 = vrot.lane.b32.xlu0 %v346, 90
        %v351 = vpop.permute.xlu0 %350
        %v352 = vrot.slane %v349, 4
        %v353 = vrot.slane %v351, 4
        %v354 = vsel %vm203, %v352, %v353
        %vm355 = vcmask 736256
        %v356 = vsel %vm355, %v349, %v354
        %v357 = vsel %vm355, %v351, %v353
        %360 = vst [vmem:[#allocation2 + $0x30] sm:$0x33] %v356
        %361 = vst [vmem:[#allocation2 + $0x38] sm:$0x3] %v357
        %v362 = vld [vmem:[#allocation6] sm:$0xf]
        %v363 = vld [vmem:[#allocation6 + $0x4] sm:$0xf]
        %v364 = vld [vmem:[#allocation6 + $0x8] sm:$0xf]
        %v365 = vld [vmem:[#allocation6 + $0xc] sm:$0xf]
        %v366 = vld [vmem:[#allocation2] sm:$0xff]
        %v367 = vld [vmem:[#allocation2 + $0x8] sm:$0xf]
        %v368 = vld [vmem:[#allocation2 + $0xc] sm:$0xff]
        %v369 = vld [vmem:[#allocation2 + $0x14] sm:$0xf]
        %v370 = vld [vmem:[#allocation2 + $0x18] sm:$0xff]
        %v371 = vld [vmem:[#allocation2 + $0x20] sm:$0xf]
        %v372 = vld [vmem:[#allocation2 + $0x24] sm:$0xff]
        %v373 = vld [vmem:[#allocation2 + $0x2c] sm:$0xf]
        %v374 = vld [vmem:[#allocation2 + $0x30] sm:$0x33]
        %v375 = vld [vmem:[#allocation2 + $0x38] sm:$0x3]
        %v380 = vunpack.c.l.b16 %v362
        %v381 = vunpack.c.l.b16 %v363
        %v382 = vunpack.c.l.b16 %v364
        %v383 = vunpack.c.l.b16 %v365
        %v384 = vpack.c.b16 %v381, %v380
        %v385 = vpack.c.b16 %v383, %v382
        %v396 = vunpack.c.l.b16 %v366
        %v397 = vunpack.c.h.b16 %v366
        %v398 = vunpack.c.l.b16 %v367
        %v399 = vunpack.c.l.b16 %v368
        %v400 = vunpack.c.h.b16 %v368
        %v401 = vunpack.c.l.b16 %v369
        %v402 = vunpack.c.l.b16 %v370
        %v403 = vunpack.c.h.b16 %v370
        %v404 = vunpack.c.l.b16 %v371
        %v405 = vunpack.c.l.b16 %v372
        %v406 = vunpack.c.h.b16 %v372
        %v407 = vunpack.c.l.b16 %v373
        %v408 = vunpack.c.l.b16 %v374
        %v409 = vunpack.c.h.b16 %v374
        %v410 = vunpack.c.l.b16 %v375
        %v411 = vpack.c.b16 %v399, %v396
        %v412 = vpack.c.b16 %v400, %v397
        %v413 = vpack.c.b16 %v401, %v398
        %v414 = vpack.c.b16 %v405, %v402
        %v415 = vpack.c.b16 %v406, %v403
        %v416 = vpack.c.b16 %v407, %v404
        %v417 = vpack.c.b16 %v408, %v408
        %v418 = vpack.c.b16 %v409, %v409
        %v419 = vpack.c.b16 %v410, %v410
        %vm426 = vcmask 293888
        %v428 = vsel %vm426, %v384, 0
        %v431 = vsel %vm426, %v385, 0
        %vm433 = vcmask 1041408
        %v435 = vsel %vm433, %v417, 0
        %v438 = vsel %vm433, %v418, 0
        %v441 = vsel %vm433, %v419, 0
        %443 = vmatpush.bf16.msra.mxu0 0
        %444 = vmatpush.bf16.msra.mxu0 0
        %445 = vmatpush.bf16.msra.mxu0 0
        %446 = vmatpush.bf16.msra.mxu0 0
        %447 = vmatpush.bf16.msra.mxu0 0
        %448 = vmatpush.bf16.msra.mxu0 %v435
        %449 = vmatpush.bf16.msra.mxu0 %v414
        %450 = vmatpush.bf16.msra.mxu0 %v411
        %451 = vmatmul.bf16.gmra.mxu0 %v428
        %v452 = vpop.f32.mrf.mxu0
        %v453 = vadd.f32 0.0, %v452
        %v454 = vpop.f32.mrf.mxu0
        %v455 = vadd.f32 0.0, %v454
        %456 = vmatmul.bf16.gmra.mxu0 %v431
        %v457 = vpop.f32.mrf.mxu0
        %v458 = vadd.f32 0.0, %v457
        %v459 = vpop.f32.mrf.mxu0
        %v460 = vadd.f32 0.0, %v459
        %461 = vdwg.mxu0
        %462 = vmatpush.bf16.msra.mxu0 0
        %463 = vmatpush.bf16.msra.mxu0 0
        %464 = vmatpush.bf16.msra.mxu0 0
        %465 = vmatpush.bf16.msra.mxu0 0
        %466 = vmatpush.bf16.msra.mxu0 0
        %467 = vmatpush.bf16.msra.mxu0 %v438
        %468 = vmatpush.bf16.msra.mxu0 %v415
        %469 = vmatpush.bf16.msra.mxu0 %v412
        %470 = vmatmul.bf16.gmra.mxu0 %v428
        %v471 = vpop.f32.mrf.mxu0
        %v472 = vadd.f32 0.0, %v471
        %v473 = vpop.f32.mrf.mxu0
        %v474 = vadd.f32 0.0, %v473
        %475 = vmatmul.bf16.gmra.mxu0 %v431
        %v476 = vpop.f32.mrf.mxu0
        %v477 = vadd.f32 0.0, %v476
        %v478 = vpop.f32.mrf.mxu0
        %v479 = vadd.f32 0.0, %v478
        %480 = vdwg.mxu0
        %481 = vmatpush.bf16.msra.mxu0 0
        %482 = vmatpush.bf16.msra.mxu0 0
        %483 = vmatpush.bf16.msra.mxu0 0
        %484 = vmatpush.bf16.msra.mxu0 0
        %485 = vmatpush.bf16.msra.mxu0 0
        %486 = vmatpush.bf16.msra.mxu0 %v441
        %487 = vmatpush.bf16.msra.mxu0 %v416
        %488 = vmatpush.bf16.msra.mxu0 %v413
        %489 = vmatmul.bf16.gmra.mxu0 %v428
        %v490 = vpop.f32.mrf.mxu0
        %v491 = vadd.f32 0.0, %v490
        %v492 = vpop.f32.mrf.mxu0
        %v493 = vadd.f32 0.0, %v492
        %494 = vmatmul.bf16.gmra.mxu0 %v431
        %v495 = vpop.f32.mrf.mxu0
        %v496 = vadd.f32 0.0, %v495
        %v497 = vpop.f32.mrf.mxu0
        %v498 = vadd.f32 0.0, %v497
        %499 = vdwg.mxu0
        %vm500 = vcmp.ge.f32.partialorder %v453, 0.0
        %vm501 = vcmp.ge.f32.partialorder %v472, 0.0
        %vm502 = vcmp.ge.f32.partialorder %v491, 0.0
        %vm503 = vcmp.ge.f32.partialorder %v455, 0.0
        %vm504 = vcmp.ge.f32.partialorder %v474, 0.0
        %vm505 = vcmp.ge.f32.partialorder %v493, 0.0
        %vm506 = vcmp.ge.f32.partialorder %v458, 0.0
        %vm507 = vcmp.ge.f32.partialorder %v477, 0.0
        %vm508 = vcmp.ge.f32.partialorder %v496, 0.0
        %vm509 = vcmp.ge.f32.partialorder %v460, 0.0
        %vm510 = vcmp.ge.f32.partialorder %v479, 0.0
        %vm511 = vcmp.ge.f32.partialorder %v498, 0.0
        %v512 = vmul.f32 %v453, 0.01
        %v513 = vmul.f32 %v472, 0.01
        %v514 = vmul.f32 %v491, 0.01
        %v515 = vmul.f32 %v455, 0.01
        %v516 = vmul.f32 %v474, 0.01
        %v517 = vmul.f32 %v493, 0.01
        %v518 = vmul.f32 %v458, 0.01
        %v519 = vmul.f32 %v477, 0.01
        %v520 = vmul.f32 %v496, 0.01
        %v521 = vmul.f32 %v460, 0.01
        %v522 = vmul.f32 %v479, 0.01
        %v523 = vmul.f32 %v498, 0.01
        %v524 = vsel %vm500, %v453, %v512
        %v525 = vsel %vm501, %v472, %v513
        %v526 = vsel %vm502, %v491, %v514
        %v527 = vsel %vm503, %v455, %v515
        %v528 = vsel %vm504, %v474, %v516
        %v529 = vsel %vm505, %v493, %v517
        %v530 = vsel %vm506, %v458, %v518
        %v531 = vsel %vm507, %v477, %v519
        %v532 = vsel %vm508, %v496, %v520
        %v533 = vsel %vm509, %v460, %v521
        %v534 = vsel %vm510, %v479, %v522
        %v535 = vsel %vm511, %v498, %v523
        %536 = vst [vmem:[%s178] sm:$0xff] %v524
        %537 = vst [vmem:[%s178 + $0x8] sm:$0xff] %v525
        %538 = vst [vmem:[%s178 + $0x10] sm:$0xff] %v526
        %539 = vst [vmem:[%s178 + $0x18] sm:$0xff] %v527
        %540 = vst [vmem:[%s178 + $0x20] sm:$0xff] %v528
        %541 = vst [vmem:[%s178 + $0x28] sm:$0xff] %v529
        %542 = vst [vmem:[%s178 + $0x30] sm:$0xff] %v530
        %543 = vst [vmem:[%s178 + $0x38] sm:$0xff] %v531
        %544 = vst [vmem:[%s178 + $0x40] sm:$0xff] %v532
        %545 = vst [vmem:[%s178 + $0x48] sm:$0xff] %v533
        %546 = vst [vmem:[%s178 + $0x50] sm:$0xff] %v534
        %547 = vst [vmem:[%s178 + $0x58] sm:$0xff] %v535
        %s548 = sand.u32 %s75, 1
        %s549 = scalar_lea.sflag [#allocation5], %s548
        %s550 = sand.u32 %s75, 1
        %s551 = smul.addr %s550, 96
        %s552 = scalar_lea.vmem [#allocation8], %s551
        // Predicated region
        $region37: #{tpu_custom_call.1} parent=27 // pred_check
          %p553 = pneg %p85
        $region38: #{tpu_custom_call.1} parent=27 // pred_check_branch
          %555 = sbr.rel (%p553) target = $region40
        $region39: #{tpu_custom_call.1} parent=27 // pred_region
          %557 = vsyncadd %s549, 0
          %s558 = smul.addr %s20, 12
          %s559 = smul.addr %s558, 8
          %s560 = scalar_lea.hbm %s2, %s559
          %s561 = sshll.u32 %s552, 4
          %s562 = int_to_ptr.vmem [resolvable:$true] %s561
          %s563 = sshll.u32 %s560, 4
          %s564 = int_to_ptr.hbm [resolvable:$true] %s563
          %569 = dma.vmem_to_hbm [thread:$0]  %s562, 1536, %s564, %s549, 384, 384, 24
        $region40: #{tpu_custom_call.1} parent=27 // pred_fallthru
          _
      $region28: #{tpu_custom_call.1} parent=5 // pred_fallthru
        _
      %p570 = scmp.le.s32.totalorder 2, %s15
      // Predicated region
      $region41: #{tpu_custom_call.1} parent=5 // pred_check
        %p571 = pneg %p570
      $region42: #{tpu_custom_call.1} parent=5 // pred_check_branch
        %573 = sbr.rel (%p571) target = $region44
      $region43: #{tpu_custom_call.1} parent=5 // pred_region
        %s574 = ssub.s32 %s15, 2
        // Predicated region
        $region45: #{tpu_custom_call.1} parent=43 // pred_check
          %p575 = pneg %p91
        $region46: #{tpu_custom_call.1} parent=43 // pred_check_branch
          %577 = sbr.rel (%p575) target = $region48
        $region47: #{tpu_custom_call.1} parent=43 // pred_region
          %s578 = sand.u32 %s76, 1
          %s579 = scalar_lea.sflag [#allocation5], %s578
          %s580 = sand.u32 %s76, 1
          %s581 = smul.addr %s580, 96
          %s582 = scalar_lea.vmem [#allocation8], %s581
          %584 = dma.done %s579, 1536
        $region48: #{tpu_custom_call.1} parent=43 // pred_fallthru
          _
      $region44: #{tpu_custom_call.1} parent=5 // pred_fallthru
        _
    $region6: #{tpu_custom_call.1} parent=1 // loop_footer
      %s19 = sadd.s32 1, %s15
    $region7: #{tpu_custom_call.1} parent=1 // loop_footer_branch
      %14 = sbr.rel target = $region3
    $region8: #{tpu_custom_call.1} parent=1 // loop_exit
      _
    %585 = vsyncpa [#allocation4], 1
    %s586 = scalar_lea.sflag [#allocation4], 1
    %587 = vsyncpa %s586, 1
    %588 = vsyncpa [#allocation7], 1
    %589 = vsyncpa [#allocation5], 1
    %s590 = scalar_lea.sflag [#allocation5], 1
    %591 = vsyncpa %s590, 1

</llo_original>
